<compile_context>
chip_gen: v7x
topology: tpu7x:2x2x1
jax: 0.10.0
libtpu: 0.0.40
codegen_flags: <defaults>
</compile_context>

<pallas_src>
import functools

import jax
import jax.numpy as jnp
from jax.experimental import pallas as pl
from jax.experimental.pallas import tpu as pltpu

HIDDEN = 512       # fixed in the PyTorch module
_LANE = 128
_SUBLANE = 8


# ---------------------------------------------------------------------------
# Stage 1: batch-invariant positional-embedding table (runs once)
# ---------------------------------------------------------------------------
def _pos_emb_table_kernel(w1_ref, b1_ref, w2_ref, pe_ref, *, n_seq, w_g):
    # Flattened index n = h * w_g + w  ->  h = floor(n / w_g), w = n - h*w_g.
    # Float division plus a where-based correction keeps this exact without
    # relying on integer-division lowering.
    s2 = jnp.float32(n_seq // 2)
    wgf = jnp.float32(w_g)
    n_f = jax.lax.broadcasted_iota(jnp.int32, (n_seq, HIDDEN), 0).astype(
        jnp.float32)
    ch = jnp.floor(n_f / wgf)
    cw = n_f - ch * wgf
    ch = jnp.where(cw < 0.0, ch - 1.0, ch)
    cw = jnp.where(cw < 0.0, cw + wgf, cw)
    ch = jnp.where(cw >= wgf, ch + 1.0, ch)
    cw = jnp.where(cw >= wgf, cw - wgf, cw)
    # Normalization matches the PyTorch module: (c - N//2) / (N//2).
    ch = (ch - s2) / s2
    cw = (cw - s2) / s2

    # First Linear has K=2: two VPU broadcast FMAs instead of an MXU matmul.
    h = ch * w1_ref[0:1, :] + cw * w1_ref[1:2, :] + b1_ref[...]
    h = jnp.maximum(h, 0.0)                                    # ReLU

    # Second Linear (512 -> D): one MXU pass, once per call.
    pe_ref[...] = jnp.dot(h, w2_ref[...], preferred_element_type=jnp.float32)


def _compute_pos_emb(n_seq, dim, w_g, w1, b1, w2):
    b1_2d = b1.reshape(1, HIDDEN)
    kernel = functools.partial(_pos_emb_table_kernel, n_seq=n_seq, w_g=w_g)
    return pl.pallas_call(
        kernel,
        out_shape=jax.ShapeDtypeStruct((n_seq, dim), jnp.float32),
        grid=(1,),
        in_specs=[
            pl.BlockSpec((2, HIDDEN), lambda i: (0, 0)),     # w1
            pl.BlockSpec((1, HIDDEN), lambda i: (0, 0)),     # b1
            pl.BlockSpec((HIDDEN, dim), lambda i: (0, 0)),   # w2
        ],
        out_specs=pl.BlockSpec((n_seq, dim), lambda i: (0, 0)),
    )(w1, b1_2d, w2)


# ---------------------------------------------------------------------------
# Stage 2: lane-dense streaming broadcast add   (B, N*D) + (1, N*D)
# ---------------------------------------------------------------------------
def _bcast_add_kernel(pe_ref, x_ref, o_ref):
    # Add in f32, cast once at the store (matters if x is bf16).
    o_ref[...] = (x_ref[...].astype(jnp.float32) + pe_ref[...]).astype(o_ref.dtype)


def _pick_lane_tile(total_elems, itemsize, max_bytes=512 * 1024):
    """Lane tile: full extent if small, else a multiple of 128 <= max_bytes."""
    cap = max(_LANE, ((max_bytes // itemsize) // _LANE) * _LANE)
    if total_elems <= cap:
        return total_elems                      # full extent: always legal
    t = cap
    while t >= _LANE:                           # prefer a divisor -> unmasked
        if total_elems % t == 0:                # stores on every block
            return t
        t -= _LANE
    return cap                                  # partial last block (masked)


def _pick_batch_tile(batch, lane_tile, itemsize, block_budget_bytes=4 << 20):
    """Largest batch tile whose (tile x lane_tile) block stays under budget."""
    rows = block_budget_bytes // max(1, lane_tile * itemsize)
    rows = max(rows, _SUBLANE)
    if batch <= rows:
        return batch                            # full extent: always legal
    return max(_SUBLANE, (rows // _SUBLANE) * _SUBLANE)


def pos_emb_mlp_swin_v1d(x, h_g, w_g, w1, b1, w2):
    """x: (B, N, D) with N == h_g * w_g. Returns x + cpb_mlp(coords)."""
    B, N, D = x.shape
    assert N == h_g * w_g, "seq_length must equal h_g * w_g for the broadcast add"

    # Batch-invariant positional embedding, computed exactly once.
    pe = _compute_pos_emb(N, D, w_g, w1, b1, w2)            # (N, D), f32

    # Lane-dense flattened views: last dim is N*D (a large multiple of 128 for
    # typical Swin shapes) -> wide unmasked vector stores in the add kernel.
    L = N * D
    x_flat = x.reshape(B, L)
    pe_flat = pe.reshape(1, L)

    itemsize = jnp.dtype(x.dtype).itemsize
    tl = _pick_lane_tile(L, itemsize)
    tb = _pick_batch_tile(B, tl, itemsize)
    # Lane axis OUTER, batch axis INNER: pe's block index is constant across
    # the inner loop, so Pallas skips its re-fetch (pe DMA'd once per lane
    # tile instead of once per grid step).
    grid = (pl.cdiv(L, tl), pl.cdiv(B, tb))

    out_flat = pl.pallas_call(
        _bcast_add_kernel,
        out_shape=jax.ShapeDtypeStruct((B, L), x.dtype),
        grid_spec=pltpu.PrefetchScalarGridSpec(
            num_scalar_prefetch=0,
            grid=grid,
            in_specs=[
                pl.BlockSpec((1, tl), lambda j, i: (0, j)),   # pe (broadcast)
                pl.BlockSpec((tb, tl), lambda j, i: (i, j)),  # x
            ],
            out_specs=pl.BlockSpec((tb, tl), lambda j, i: (i, j)),
        ),
        compiler_params=pltpu.CompilerParams(
            # Both axes independent -> v7x can shard across its 2 TensorCores.
            dimension_semantics=("parallel", "parallel"),
            # ~4 MiB blocks, double-buffered x/out + small pe: <~18 MiB live.
            # Fits every generation; state the budget explicitly for v7x.
            vmem_limit_bytes=32 * 1024 * 1024,
        ),
    )(pe_flat, x_flat)

    return out_flat.reshape(B, N, D)


# ---------------------------------------------------------------------------
# Pure-JAX reference (mirrors the PyTorch forward, rank=2, conv=False)
# ---------------------------------------------------------------------------
def _reference(x, h_g, w_g, w1, b1, w2):
    B, N, D = x.shape
    s2 = N // 2
    ch = jnp.arange(h_g, dtype=jnp.float32)
    cw = jnp.arange(w_g, dtype=jnp.float32)
    hh, ww = jnp.meshgrid(ch, cw, indexing="ij")
    coords = jnp.stack([hh, ww], axis=0)
    coords = (coords - s2) / s2
    coords = coords.reshape(2, N).T
    h = jnp.maximum(coords @ w1 + b1, 0.0)
    pe = h @ w2
    return x + pe[None].astype(x.dtype)


if __name__ == "__main__":
    key = jax.random.PRNGKey(0)
    k_x, k_w1, k_b1, k_w2 = jax.random.split(key, 4)

    # Small shapes consistent with the module: rank=2, dim=64, h_g=w_g=8.
    B, h_g, w_g, D = 2, 8, 8, 64
    N = h_g * w_g  # seq_length = 64

    x = jax.random.normal(k_x, (B, N, D), dtype=jnp.float32)
    # Parameters, stored as (in, out) i.e. already-transposed nn.Linear weights.
    w1 = jax.random.normal(k_w1, (2, HIDDEN), dtype=jnp.float32) * 0.1
    b1 = jax.random.normal(k_b1, (HIDDEN,), dtype=jnp.float32) * 0.1
    w2 = jax.random.normal(k_w2, (HIDDEN, D), dtype=jnp.float32) * 0.05

    out = pos_emb_mlp_swin_v1d(x, h_g, w_g, w1, b1, w2)
    out = jax.block_until_ready(out)

    ref = _reference(x, h_g, w_g, w1, b1, w2)
    assert jnp.allclose(out, ref, atol=1e-4, rtol=1e-4), "mismatch vs reference"

    print("KERNEL_OK")
</pallas_src>

<mosaic_0001>
module attributes {stable_mosaic.version = 11 : i64} {
  func.func @_pos_emb_table_kernel(%arg0: i32, %arg1: memref<2x512xf32, #tpu.memory_space<vmem>>, %arg2: memref<1x512xf32, #tpu.memory_space<vmem>>, %arg3: memref<512x64xf32, #tpu.memory_space<vmem>>, %arg4: memref<64x64xf32, #tpu.memory_space<vmem>>) attributes {dimension_semantics = [#tpu.dimension_semantics<arbitrary>], iteration_bounds = array<i64: 1>, scalar_prefetch = 0 : i64, scratch_operands = 0 : i64, tpu.core_type = #tpu.core_type<tc>, window_params = [{pipeline_mode = #tpu.pipeline_mode<synchronous>, transform_indices = @transform_0, window_bounds = array<i64: 2, 512>}, {pipeline_mode = #tpu.pipeline_mode<synchronous>, transform_indices = @transform_1, window_bounds = array<i64: 1, 512>}, {pipeline_mode = #tpu.pipeline_mode<synchronous>, transform_indices = @transform_2, window_bounds = array<i64: 512, 64>}, {pipeline_mode = #tpu.pipeline_mode<synchronous>, transform_indices = @transform_3, window_bounds = array<i64: 64, 64>}]} {
    %0 = tpu.iota {dimensions = array<i32: 0>} : vector<64x512xi32>
    %1 = arith.sitofp %0 : vector<64x512xi32> to vector<64x512xf32>
    %cst = arith.constant 8.000000e+00 : f32
    %2 = vector.broadcast %cst : f32 to vector<64x512xf32>
    %3 = arith.divf %1, %2 : vector<64x512xf32>
    %4 = math.floor %3 : vector<64x512xf32>
    %cst_0 = arith.constant 8.000000e+00 : f32
    %5 = vector.broadcast %cst_0 : f32 to vector<64x512xf32>
    %6 = arith.mulf %4, %5 : vector<64x512xf32>
    %7 = arith.subf %1, %6 : vector<64x512xf32>
    %cst_1 = arith.constant 0.000000e+00 : f32
    %8 = vector.broadcast %cst_1 : f32 to vector<64x512xf32>
    %9 = arith.cmpf olt, %7, %8 : vector<64x512xf32>
    %cst_2 = arith.constant 1.000000e+00 : f32
    %10 = vector.broadcast %cst_2 : f32 to vector<64x512xf32>
    %11 = arith.subf %4, %10 : vector<64x512xf32>
    %12 = arith.select %9, %11, %4 : vector<64x512xi1>, vector<64x512xf32>
    %cst_3 = arith.constant 0.000000e+00 : f32
    %13 = vector.broadcast %cst_3 : f32 to vector<64x512xf32>
    %14 = arith.cmpf olt, %7, %13 : vector<64x512xf32>
    %cst_4 = arith.constant 8.000000e+00 : f32
    %15 = vector.broadcast %cst_4 : f32 to vector<64x512xf32>
    %16 = arith.addf %7, %15 : vector<64x512xf32>
    %17 = arith.select %14, %16, %7 : vector<64x512xi1>, vector<64x512xf32>
    %cst_5 = arith.constant 8.000000e+00 : f32
    %18 = vector.broadcast %cst_5 : f32 to vector<64x512xf32>
    %19 = arith.cmpf oge, %17, %18 : vector<64x512xf32>
    %cst_6 = arith.constant 1.000000e+00 : f32
    %20 = vector.broadcast %cst_6 : f32 to vector<64x512xf32>
    %21 = arith.addf %12, %20 : vector<64x512xf32>
    %22 = arith.select %19, %21, %12 : vector<64x512xi1>, vector<64x512xf32>
    %cst_7 = arith.constant 8.000000e+00 : f32
    %23 = vector.broadcast %cst_7 : f32 to vector<64x512xf32>
    %24 = arith.cmpf oge, %17, %23 : vector<64x512xf32>
    %cst_8 = arith.constant 8.000000e+00 : f32
    %25 = vector.broadcast %cst_8 : f32 to vector<64x512xf32>
    %26 = arith.subf %17, %25 : vector<64x512xf32>
    %27 = arith.select %24, %26, %17 : vector<64x512xi1>, vector<64x512xf32>
    %cst_9 = arith.constant 3.200000e+01 : f32
    %28 = vector.broadcast %cst_9 : f32 to vector<64x512xf32>
    %29 = arith.subf %22, %28 : vector<64x512xf32>
    %cst_10 = arith.constant 3.200000e+01 : f32
    %30 = vector.broadcast %cst_10 : f32 to vector<64x512xf32>
    %31 = arith.divf %29, %30 : vector<64x512xf32>
    %cst_11 = arith.constant 3.200000e+01 : f32
    %32 = vector.broadcast %cst_11 : f32 to vector<64x512xf32>
    %33 = arith.subf %27, %32 : vector<64x512xf32>
    %cst_12 = arith.constant 3.200000e+01 : f32
    %34 = vector.broadcast %cst_12 : f32 to vector<64x512xf32>
    %35 = arith.divf %33, %34 : vector<64x512xf32>
    %c0 = arith.constant 0 : index
    %c0_13 = arith.constant 0 : index
    %36 = vector.load %arg1[%c0, %c0_13] : memref<2x512xf32, #tpu.memory_space<vmem>>, vector<1x512xf32>
    %37 = vector.broadcast %36 : vector<1x512xf32> to vector<64x512xf32>
    %38 = arith.mulf %31, %37 : vector<64x512xf32>
    %c1 = arith.constant 1 : index
    %c0_14 = arith.constant 0 : index
    %39 = vector.load %arg1[%c1, %c0_14] : memref<2x512xf32, #tpu.memory_space<vmem>>, vector<1x512xf32>
    %40 = vector.broadcast %39 : vector<1x512xf32> to vector<64x512xf32>
    %41 = arith.mulf %35, %40 : vector<64x512xf32>
    %42 = arith.addf %38, %41 : vector<64x512xf32>
    %c0_15 = arith.constant 0 : index
    %c0_16 = arith.constant 0 : index
    %43 = vector.load %arg2[%c0_15, %c0_16] : memref<1x512xf32, #tpu.memory_space<vmem>>, vector<1x512xf32>
    %44 = vector.broadcast %43 : vector<1x512xf32> to vector<64x512xf32>
    %45 = arith.addf %42, %44 : vector<64x512xf32>
    %cst_17 = arith.constant 0.000000e+00 : f32
    %46 = vector.broadcast %cst_17 : f32 to vector<64x512xf32>
    %47 = arith.maximumf %45, %46 : vector<64x512xf32>
    %c0_18 = arith.constant 0 : index
    %c0_19 = arith.constant 0 : index
    %48 = vector.load %arg3[%c0_18, %c0_19] : memref<512x64xf32, #tpu.memory_space<vmem>>, vector<512x64xf32>
    %cst_20 = arith.constant dense<0.000000e+00> : vector<64x64xf32>
    %49 = tpu.matmul %47, %48, %cst_20 {dimension_numbers = #tpu.dot_dimension_numbers<[1], [0], [0], [1], [0, 0, 1, 1], [], []>} : vector<64x512xf32>, vector<512x64xf32>, vector<64x64xf32> -> vector<64x64xf32>
    %c0_21 = arith.constant 0 : index
    %c0_22 = arith.constant 0 : index
    %50 = vector.load %arg4[%c0_21, %c0_22] : memref<64x64xf32, #tpu.memory_space<vmem>>, vector<64x64xf32>
    tpu.vector_store %arg4[%c0_21, %c0_22], %49 {strides = array<i32>} : memref<64x64xf32, #tpu.memory_space<vmem>>, vector<64x64xf32>,
    return
  }
  func.func @transform_0(%arg0: i32) -> (i32, i32) {
    %c0_i32 = arith.constant 0 : i32
    %c0_i32_0 = arith.constant 0 : i32
    %c0_i32_1 = arith.constant 0 : i32
    return %c0_i32, %c0_i32_0 : i32, i32
  }
  func.func @transform_1(%arg0: i32) -> (i32, i32) {
    %c0_i32 = arith.constant 0 : i32
    %c0_i32_0 = arith.constant 0 : i32
    %c0_i32_1 = arith.constant 0 : i32
    return %c0_i32, %c0_i32_0 : i32, i32
  }
  func.func @transform_2(%arg0: i32) -> (i32, i32) {
    %c0_i32 = arith.constant 0 : i32
    %c0_i32_0 = arith.constant 0 : i32
    %c0_i32_1 = arith.constant 0 : i32
    return %c0_i32, %c0_i32_0 : i32, i32
  }
  func.func @transform_3(%arg0: i32) -> (i32, i32) {
    %c0_i32 = arith.constant 0 : i32
    %c0_i32_0 = arith.constant 0 : i32
    %c0_i32_1 = arith.constant 0 : i32
    return %c0_i32, %c0_i32_0 : i32, i32
  }
}

</mosaic_0001>

<llo_original>
// kernel: tpu_custom_call.1
$region0: #{tpu_custom_call.1}
  #allocation0 [shape = 'u32[]', space=smem, size = 0x4, offset = 0x4, fixed_abs, tag = 'smem constant byte address 0x4 - core index']
  #allocation1 [shape = 'u32[144,128]{1,0:T(1,128)}', space=vmem, size = 0x12000, scoped, tag = 'internal scratch']
  %s0 = inlined_call_operand.vmem [shape: f32[2,512], index: 0, kind: input, shape index: {}]
  %s1 = inlined_call_operand.vmem [shape: f32[1,512], index: 1, kind: input, shape index: {}]
  %s2 = inlined_call_operand.vmem [shape: f32[512,64], index: 2, kind: input, shape index: {}]
  %s3 = inlined_call_operand.hbm [shape: f32[64,64], index: 3, kind: output, shape index: {}]
  %s4 = sld [smem:[#allocation0]]
  $region22: #{tpu_custom_call.1} parent=0
    _
  %s6 = ssub.s32 1, %s4
  %s7 = scalar_select 0, %s6, %s4
  $region1: #{tpu_custom_call.1} parent=0
    #allocation2 [shape = 'u8[32768]{0}', space=vmem, size = 0x8000, scoped, tag = 'output window, operand 0, single buffered']
    #allocation3 [shape = 's32[1]{0}', space=sflag, size = 0x4, scoped, tag = 'scoped memory for tpu_custom_call.1']
    %8 = vsyncpa [#allocation3], 0
    // Predicated region
    $region2: #{tpu_custom_call.1} parent=1 // pred_check
      _
    $region3: #{tpu_custom_call.1} parent=1 // pred_check_branch
      %10 = sbr.rel (0) target = $region5
    $region4: #{tpu_custom_call.1} parent=1 // pred_region
      _
    $region5: #{tpu_custom_call.1} parent=1 // pred_fallthru
      _
    // Predicated region
    $region6: #{tpu_custom_call.1} parent=1 // pred_check
      _
    $region7: #{tpu_custom_call.1} parent=1 // pred_check_branch
      %12 = sbr.rel (0) target = $region9
    $region8: #{tpu_custom_call.1} parent=1 // pred_region
      _
    $region9: #{tpu_custom_call.1} parent=1 // pred_fallthru
      _
    // Predicated region
    $region10: #{tpu_custom_call.1} parent=1 // pred_check
      _
    $region11: #{tpu_custom_call.1} parent=1 // pred_check_branch
      %14 = sbr.rel (0) target = $region13
    $region12: #{tpu_custom_call.1} parent=1 // pred_region
      _
    $region13: #{tpu_custom_call.1} parent=1 // pred_fallthru
      _
    %v15 = vlaneseq
    %v16 = vshrl.u32 %v15, 7
    %v17 = vadd.s32 %v16, 8
    %v18 = vadd.s32 %v16, 16
    %v19 = vadd.s32 %v16, 24
    %v20 = vadd.s32 %v16, 32
    %v21 = vadd.s32 %v16, 40
    %v22 = vadd.s32 %v16, 48
    %v23 = vadd.s32 %v16, 56
    %v24 = vcvt.s32.f32 %v16
    %v25 = vcvt.s32.f32 %v17
    %v26 = vcvt.s32.f32 %v18
    %v27 = vcvt.s32.f32 %v19
    %v28 = vcvt.s32.f32 %v20
    %v29 = vcvt.s32.f32 %v21
    %v30 = vcvt.s32.f32 %v22
    %v31 = vcvt.s32.f32 %v23
    %v32 = vrcp.pop 8.0
    %v33 = vmul.f32 %v24, %v32
    %v34 = vmul.f32 %v25, %v32
    %v35 = vmul.f32 %v26, %v32
    %v36 = vmul.f32 %v27, %v32
    %v37 = vmul.f32 %v28, %v32
    %v38 = vmul.f32 %v29, %v32
    %v39 = vmul.f32 %v30, %v32
    %v40 = vmul.f32 %v31, %v32
    %v41 = vfloor.f32 %v33
    %v42 = vfloor.f32 %v34
    %v43 = vfloor.f32 %v35
    %v44 = vfloor.f32 %v36
    %v45 = vfloor.f32 %v37
    %v46 = vfloor.f32 %v38
    %v47 = vfloor.f32 %v39
    %v48 = vfloor.f32 %v40
    %v49 = vmul.f32 %v41, 8.0
    %v50 = vmul.f32 %v42, 8.0
    %v51 = vmul.f32 %v43, 8.0
    %v52 = vmul.f32 %v44, 8.0
    %v53 = vmul.f32 %v45, 8.0
    %v54 = vmul.f32 %v46, 8.0
    %v55 = vmul.f32 %v47, 8.0
    %v56 = vmul.f32 %v48, 8.0
    %v57 = vsub.f32 %v24, %v49
    %v58 = vsub.f32 %v25, %v50
    %v59 = vsub.f32 %v26, %v51
    %v60 = vsub.f32 %v27, %v52
    %v61 = vsub.f32 %v28, %v53
    %v62 = vsub.f32 %v29, %v54
    %v63 = vsub.f32 %v30, %v55
    %v64 = vsub.f32 %v31, %v56
    %vm65 = vcmp.lt.f32.partialorder %v57, 0.0
    %vm66 = vcmp.lt.f32.partialorder %v58, 0.0
    %vm67 = vcmp.lt.f32.partialorder %v59, 0.0
    %vm68 = vcmp.lt.f32.partialorder %v60, 0.0
    %vm69 = vcmp.lt.f32.partialorder %v61, 0.0
    %vm70 = vcmp.lt.f32.partialorder %v62, 0.0
    %vm71 = vcmp.lt.f32.partialorder %v63, 0.0
    %vm72 = vcmp.lt.f32.partialorder %v64, 0.0
    %v73 = vsub.f32 %v41, 1.0
    %v74 = vsub.f32 %v42, 1.0
    %v75 = vsub.f32 %v43, 1.0
    %v76 = vsub.f32 %v44, 1.0
    %v77 = vsub.f32 %v45, 1.0
    %v78 = vsub.f32 %v46, 1.0
    %v79 = vsub.f32 %v47, 1.0
    %v80 = vsub.f32 %v48, 1.0
    %v81 = vsel %vm65, %v73, %v41
    %v82 = vsel %vm66, %v74, %v42
    %v83 = vsel %vm67, %v75, %v43
    %v84 = vsel %vm68, %v76, %v44
    %v85 = vsel %vm69, %v77, %v45
    %v86 = vsel %vm70, %v78, %v46
    %v87 = vsel %vm71, %v79, %v47
    %v88 = vsel %vm72, %v80, %v48
    %v89 = vadd.f32 %v57, 8.0
    %v90 = vadd.f32 %v58, 8.0
    %v91 = vadd.f32 %v59, 8.0
    %v92 = vadd.f32 %v60, 8.0
    %v93 = vadd.f32 %v61, 8.0
    %v94 = vadd.f32 %v62, 8.0
    %v95 = vadd.f32 %v63, 8.0
    %v96 = vadd.f32 %v64, 8.0
    %v97 = vsel %vm65, %v89, %v57
    %v98 = vsel %vm66, %v90, %v58
    %v99 = vsel %vm67, %v91, %v59
    %v100 = vsel %vm68, %v92, %v60
    %v101 = vsel %vm69, %v93, %v61
    %v102 = vsel %vm70, %v94, %v62
    %v103 = vsel %vm71, %v95, %v63
    %v104 = vsel %vm72, %v96, %v64
    %vm105 = vcmp.ge.f32.partialorder %v97, 8.0
    %vm106 = vcmp.ge.f32.partialorder %v98, 8.0
    %vm107 = vcmp.ge.f32.partialorder %v99, 8.0
    %vm108 = vcmp.ge.f32.partialorder %v100, 8.0
    %vm109 = vcmp.ge.f32.partialorder %v101, 8.0
    %vm110 = vcmp.ge.f32.partialorder %v102, 8.0
    %vm111 = vcmp.ge.f32.partialorder %v103, 8.0
    %vm112 = vcmp.ge.f32.partialorder %v104, 8.0
    %v113 = vadd.f32 %v81, 1.0
    %v114 = vadd.f32 %v82, 1.0
    %v115 = vadd.f32 %v83, 1.0
    %v116 = vadd.f32 %v84, 1.0
    %v117 = vadd.f32 %v85, 1.0
    %v118 = vadd.f32 %v86, 1.0
    %v119 = vadd.f32 %v87, 1.0
    %v120 = vadd.f32 %v88, 1.0
    %v121 = vsel %vm105, %v113, %v81
    %v122 = vsel %vm106, %v114, %v82
    %v123 = vsel %vm107, %v115, %v83
    %v124 = vsel %vm108, %v116, %v84
    %v125 = vsel %vm109, %v117, %v85
    %v126 = vsel %vm110, %v118, %v86
    %v127 = vsel %vm111, %v119, %v87
    %v128 = vsel %vm112, %v120, %v88
    %v129 = vsub.f32 %v97, 8.0
    %v130 = vsub.f32 %v98, 8.0
    %v131 = vsub.f32 %v99, 8.0
    %v132 = vsub.f32 %v100, 8.0
    %v133 = vsub.f32 %v101, 8.0
    %v134 = vsub.f32 %v102, 8.0
    %v135 = vsub.f32 %v103, 8.0
    %v136 = vsub.f32 %v104, 8.0
    %v137 = vsel %vm105, %v129, %v97
    %v138 = vsel %vm106, %v130, %v98
    %v139 = vsel %vm107, %v131, %v99
    %v140 = vsel %vm108, %v132, %v100
    %v141 = vsel %vm109, %v133, %v101
    %v142 = vsel %vm110, %v134, %v102
    %v143 = vsel %vm111, %v135, %v103
    %v144 = vsel %vm112, %v136, %v104
    %v145 = vsub.f32 %v121, 32.0
    %v146 = vsub.f32 %v122, 32.0
    %v147 = vsub.f32 %v123, 32.0
    %v148 = vsub.f32 %v124, 32.0
    %v149 = vsub.f32 %v125, 32.0
    %v150 = vsub.f32 %v126, 32.0
    %v151 = vsub.f32 %v127, 32.0
    %v152 = vsub.f32 %v128, 32.0
    %v153 = vrcp.pop 32.0
    %v154 = vmul.f32 %v145, %v153
    %v155 = vmul.f32 %v146, %v153
    %v156 = vmul.f32 %v147, %v153
    %v157 = vmul.f32 %v148, %v153
    %v158 = vmul.f32 %v149, %v153
    %v159 = vmul.f32 %v150, %v153
    %v160 = vmul.f32 %v151, %v153
    %v161 = vmul.f32 %v152, %v153
    %v162 = vsub.f32 %v137, 32.0
    %v163 = vsub.f32 %v138, 32.0
    %v164 = vsub.f32 %v139, 32.0
    %v165 = vsub.f32 %v140, 32.0
    %v166 = vsub.f32 %v141, 32.0
    %v167 = vsub.f32 %v142, 32.0
    %v168 = vsub.f32 %v143, 32.0
    %v169 = vsub.f32 %v144, 32.0
    %v170 = vmul.f32 %v162, %v153
    %v171 = vmul.f32 %v163, %v153
    %v172 = vmul.f32 %v164, %v153
    %v173 = vmul.f32 %v165, %v153
    %v174 = vmul.f32 %v166, %v153
    %v175 = vmul.f32 %v167, %v153
    %v176 = vmul.f32 %v168, %v153
    %v177 = vmul.f32 %v169, %v153
    %v178 = vld [vmem:[%s0] ss:$2 sm:$0xf]
    %v180 = vlaneseq
    %v181 = vshrl.u32 %v180, 7
    %v182 = vsub.s32 0, %v181
    %v183 = vrot.slane %v178, %v182
    %v184 = vlaneseq
    %v185 = vshrl.u32 %v184, 7
    %v186 = vsub.s32 1, %v185
    %v187 = vrot.slane %v178, %v186
    %v188 = vlaneseq
    %v189 = vshrl.u32 %v188, 7
    %v190 = vsub.s32 2, %v189
    %v191 = vrot.slane %v178, %v190
    %v192 = vlaneseq
    %v193 = vshrl.u32 %v192, 7
    %v194 = vsub.s32 3, %v193
    %v195 = vrot.slane %v178, %v194
    %v200 = vmul.f32 %v154, %v183
    %v201 = vmul.f32 %v154, %v187
    %v202 = vmul.f32 %v154, %v191
    %v203 = vmul.f32 %v154, %v195
    %v204 = vmul.f32 %v155, %v183
    %v205 = vmul.f32 %v155, %v187
    %v206 = vmul.f32 %v155, %v191
    %v207 = vmul.f32 %v155, %v195
    %v208 = vmul.f32 %v156, %v183
    %v209 = vmul.f32 %v156, %v187
    %v210 = vmul.f32 %v156, %v191
    %v211 = vmul.f32 %v156, %v195
    %v212 = vmul.f32 %v157, %v183
    %v213 = vmul.f32 %v157, %v187
    %v214 = vmul.f32 %v157, %v191
    %v215 = vmul.f32 %v157, %v195
    %v216 = vmul.f32 %v158, %v183
    %v217 = vmul.f32 %v158, %v187
    %v218 = vmul.f32 %v158, %v191
    %v219 = vmul.f32 %v158, %v195
    %v220 = vmul.f32 %v159, %v183
    %v221 = vmul.f32 %v159, %v187
    %v222 = vmul.f32 %v159, %v191
    %v223 = vmul.f32 %v159, %v195
    %v224 = vmul.f32 %v160, %v183
    %v225 = vmul.f32 %v160, %v187
    %v226 = vmul.f32 %v160, %v191
    %v227 = vmul.f32 %v160, %v195
    %v228 = vmul.f32 %v161, %v183
    %v229 = vmul.f32 %v161, %v187
    %v230 = vmul.f32 %v161, %v191
    %v231 = vmul.f32 %v161, %v195
    %s232 = scalar_lea.vmem %s0, 1
    %v233 = vld [vmem:[%s232] ss:$2 sm:$0xf]
    %v235 = vlaneseq
    %v236 = vshrl.u32 %v235, 7
    %v237 = vsub.s32 0, %v236
    %v238 = vrot.slane %v233, %v237
    %v239 = vlaneseq
    %v240 = vshrl.u32 %v239, 7
    %v241 = vsub.s32 1, %v240
    %v242 = vrot.slane %v233, %v241
    %v243 = vlaneseq
    %v244 = vshrl.u32 %v243, 7
    %v245 = vsub.s32 2, %v244
    %v246 = vrot.slane %v233, %v245
    %v247 = vlaneseq
    %v248 = vshrl.u32 %v247, 7
    %v249 = vsub.s32 3, %v248
    %v250 = vrot.slane %v233, %v249
    %v255 = vmul.f32 %v170, %v238
    %v256 = vmul.f32 %v170, %v242
    %v257 = vmul.f32 %v170, %v246
    %v258 = vmul.f32 %v170, %v250
    %v259 = vmul.f32 %v171, %v238
    %v260 = vmul.f32 %v171, %v242
    %v261 = vmul.f32 %v171, %v246
    %v262 = vmul.f32 %v171, %v250
    %v263 = vmul.f32 %v172, %v238
    %v264 = vmul.f32 %v172, %v242
    %v265 = vmul.f32 %v172, %v246
    %v266 = vmul.f32 %v172, %v250
    %v267 = vmul.f32 %v173, %v238
    %v268 = vmul.f32 %v173, %v242
    %v269 = vmul.f32 %v173, %v246
    %v270 = vmul.f32 %v173, %v250
    %v271 = vmul.f32 %v174, %v238
    %v272 = vmul.f32 %v174, %v242
    %v273 = vmul.f32 %v174, %v246
    %v274 = vmul.f32 %v174, %v250
    %v275 = vmul.f32 %v175, %v238
    %v276 = vmul.f32 %v175, %v242
    %v277 = vmul.f32 %v175, %v246
    %v278 = vmul.f32 %v175, %v250
    %v279 = vmul.f32 %v176, %v238
    %v280 = vmul.f32 %v176, %v242
    %v281 = vmul.f32 %v176, %v246
    %v282 = vmul.f32 %v176, %v250
    %v283 = vmul.f32 %v177, %v238
    %v284 = vmul.f32 %v177, %v242
    %v285 = vmul.f32 %v177, %v246
    %v286 = vmul.f32 %v177, %v250
    %v287 = vadd.f32 %v200, %v255
    %v288 = vadd.f32 %v201, %v256
    %v289 = vadd.f32 %v202, %v257
    %v290 = vadd.f32 %v203, %v258
    %v291 = vadd.f32 %v204, %v259
    %v292 = vadd.f32 %v205, %v260
    %v293 = vadd.f32 %v206, %v261
    %v294 = vadd.f32 %v207, %v262
    %v295 = vadd.f32 %v208, %v263
    %v296 = vadd.f32 %v209, %v264
    %v297 = vadd.f32 %v210, %v265
    %v298 = vadd.f32 %v211, %v266
    %v299 = vadd.f32 %v212, %v267
    %v300 = vadd.f32 %v213, %v268
    %v301 = vadd.f32 %v214, %v269
    %v302 = vadd.f32 %v215, %v270
    %v303 = vadd.f32 %v216, %v271
    %v304 = vadd.f32 %v217, %v272
    %v305 = vadd.f32 %v218, %v273
    %v306 = vadd.f32 %v219, %v274
    %v307 = vadd.f32 %v220, %v275
    %v308 = vadd.f32 %v221, %v276
    %v309 = vadd.f32 %v222, %v277
    %v310 = vadd.f32 %v223, %v278
    %v311 = vadd.f32 %v224, %v279
    %v312 = vadd.f32 %v225, %v280
    %v313 = vadd.f32 %v226, %v281
    %v314 = vadd.f32 %v227, %v282
    %v315 = vadd.f32 %v228, %v283
    %v316 = vadd.f32 %v229, %v284
    %v317 = vadd.f32 %v230, %v285
    %v318 = vadd.f32 %v231, %v286
    %v319 = vld [vmem:[%s1] sm:$0xf]
    %v321 = vlaneseq
    %v322 = vshrl.u32 %v321, 7
    %v323 = vsub.s32 0, %v322
    %v324 = vrot.slane %v319, %v323
    %v325 = vlaneseq
    %v326 = vshrl.u32 %v325, 7
    %v327 = vsub.s32 1, %v326
    %v328 = vrot.slane %v319, %v327
    %v329 = vlaneseq
    %v330 = vshrl.u32 %v329, 7
    %v331 = vsub.s32 2, %v330
    %v332 = vrot.slane %v319, %v331
    %v333 = vlaneseq
    %v334 = vshrl.u32 %v333, 7
    %v335 = vsub.s32 3, %v334
    %v336 = vrot.slane %v319, %v335
    %v341 = vadd.f32 %v287, %v324
    %v342 = vadd.f32 %v288, %v328
    %v343 = vadd.f32 %v289, %v332
    %v344 = vadd.f32 %v290, %v336
    %v345 = vadd.f32 %v291, %v324
    %v346 = vadd.f32 %v292, %v328
    %v347 = vadd.f32 %v293, %v332
    %v348 = vadd.f32 %v294, %v336
    %v349 = vadd.f32 %v295, %v324
    %v350 = vadd.f32 %v296, %v328
    %v351 = vadd.f32 %v297, %v332
    %v352 = vadd.f32 %v298, %v336
    %v353 = vadd.f32 %v299, %v324
    %v354 = vadd.f32 %v300, %v328
    %v355 = vadd.f32 %v301, %v332
    %v356 = vadd.f32 %v302, %v336
    %v357 = vadd.f32 %v303, %v324
    %v358 = vadd.f32 %v304, %v328
    %v359 = vadd.f32 %v305, %v332
    %v360 = vadd.f32 %v306, %v336
    %v361 = vadd.f32 %v307, %v324
    %v362 = vadd.f32 %v308, %v328
    %v363 = vadd.f32 %v309, %v332
    %v364 = vadd.f32 %v310, %v336
    %v365 = vadd.f32 %v311, %v324
    %v366 = vadd.f32 %v312, %v328
    %v367 = vadd.f32 %v313, %v332
    %v368 = vadd.f32 %v314, %v336
    %v369 = vadd.f32 %v315, %v324
    %v370 = vadd.f32 %v316, %v328
    %v371 = vadd.f32 %v317, %v332
    %v372 = vadd.f32 %v318, %v336
    %v373 = vmax.f32 %v341, 0.0
    %v374 = vmax.f32 %v342, 0.0
    %v375 = vmax.f32 %v343, 0.0
    %v376 = vmax.f32 %v344, 0.0
    %v377 = vmax.f32 %v345, 0.0
    %v378 = vmax.f32 %v346, 0.0
    %v379 = vmax.f32 %v347, 0.0
    %v380 = vmax.f32 %v348, 0.0
    %v381 = vmax.f32 %v349, 0.0
    %v382 = vmax.f32 %v350, 0.0
    %v383 = vmax.f32 %v351, 0.0
    %v384 = vmax.f32 %v352, 0.0
    %v385 = vmax.f32 %v353, 0.0
    %v386 = vmax.f32 %v354, 0.0
    %v387 = vmax.f32 %v355, 0.0
    %v388 = vmax.f32 %v356, 0.0
    %v389 = vmax.f32 %v357, 0.0
    %v390 = vmax.f32 %v358, 0.0
    %v391 = vmax.f32 %v359, 0.0
    %v392 = vmax.f32 %v360, 0.0
    %v393 = vmax.f32 %v361, 0.0
    %v394 = vmax.f32 %v362, 0.0
    %v395 = vmax.f32 %v363, 0.0
    %v396 = vmax.f32 %v364, 0.0
    %v397 = vmax.f32 %v365, 0.0
    %v398 = vmax.f32 %v366, 0.0
    %v399 = vmax.f32 %v367, 0.0
    %v400 = vmax.f32 %v368, 0.0
    %v401 = vmax.f32 %v369, 0.0
    %v402 = vmax.f32 %v370, 0.0
    %v403 = vmax.f32 %v371, 0.0
    %v404 = vmax.f32 %v372, 0.0
    %v405 = vld [vmem:[%s2] sm:$0xff]
    %v406 = vld [vmem:[%s2 + $0x8] sm:$0xff]
    %v407 = vld [vmem:[%s2 + $0x10] sm:$0xff]
    %v408 = vld [vmem:[%s2 + $0x18] sm:$0xff]
    %v409 = vld [vmem:[%s2 + $0x20] sm:$0xff]
    %v410 = vld [vmem:[%s2 + $0x28] sm:$0xff]
    %v411 = vld [vmem:[%s2 + $0x30] sm:$0xff]
    %v412 = vld [vmem:[%s2 + $0x38] sm:$0xff]
    %v413 = vld [vmem:[%s2 + $0x40] sm:$0xff]
    %v414 = vld [vmem:[%s2 + $0x48] sm:$0xff]
    %v415 = vld [vmem:[%s2 + $0x50] sm:$0xff]
    %v416 = vld [vmem:[%s2 + $0x58] sm:$0xff]
    %v417 = vld [vmem:[%s2 + $0x60] sm:$0xff]
    %v418 = vld [vmem:[%s2 + $0x68] sm:$0xff]
    %v419 = vld [vmem:[%s2 + $0x70] sm:$0xff]
    %v420 = vld [vmem:[%s2 + $0x78] sm:$0xff]
    %v421 = vld [vmem:[%s2 + $0x80] sm:$0xff]
    %v422 = vld [vmem:[%s2 + $0x88] sm:$0xff]
    %v423 = vld [vmem:[%s2 + $0x90] sm:$0xff]
    %v424 = vld [vmem:[%s2 + $0x98] sm:$0xff]
    %v425 = vld [vmem:[%s2 + $0xa0] sm:$0xff]
    %v426 = vld [vmem:[%s2 + $0xa8] sm:$0xff]
    %v427 = vld [vmem:[%s2 + $0xb0] sm:$0xff]
    %v428 = vld [vmem:[%s2 + $0xb8] sm:$0xff]
    %v429 = vld [vmem:[%s2 + $0xc0] sm:$0xff]
    %v430 = vld [vmem:[%s2 + $0xc8] sm:$0xff]
    %v431 = vld [vmem:[%s2 + $0xd0] sm:$0xff]
    %v432 = vld [vmem:[%s2 + $0xd8] sm:$0xff]
    %v433 = vld [vmem:[%s2 + $0xe0] sm:$0xff]
    %v434 = vld [vmem:[%s2 + $0xe8] sm:$0xff]
    %v435 = vld [vmem:[%s2 + $0xf0] sm:$0xff]
    %v436 = vld [vmem:[%s2 + $0xf8] sm:$0xff]
    %v437 = vld [vmem:[%s2 + $0x100] sm:$0xff]
    %v438 = vld [vmem:[%s2 + $0x108] sm:$0xff]
    %v439 = vld [vmem:[%s2 + $0x110] sm:$0xff]
    %v440 = vld [vmem:[%s2 + $0x118] sm:$0xff]
    %v441 = vld [vmem:[%s2 + $0x120] sm:$0xff]
    %v442 = vld [vmem:[%s2 + $0x128] sm:$0xff]
    %v443 = vld [vmem:[%s2 + $0x130] sm:$0xff]
    %v444 = vld [vmem:[%s2 + $0x138] sm:$0xff]
    %v445 = vld [vmem:[%s2 + $0x140] sm:$0xff]
    %v446 = vld [vmem:[%s2 + $0x148] sm:$0xff]
    %v447 = vld [vmem:[%s2 + $0x150] sm:$0xff]
    %v448 = vld [vmem:[%s2 + $0x158] sm:$0xff]
    %v449 = vld [vmem:[%s2 + $0x160] sm:$0xff]
    %v450 = vld [vmem:[%s2 + $0x168] sm:$0xff]
    %v451 = vld [vmem:[%s2 + $0x170] sm:$0xff]
    %v452 = vld [vmem:[%s2 + $0x178] sm:$0xff]
    %v453 = vld [vmem:[%s2 + $0x180] sm:$0xff]
    %v454 = vld [vmem:[%s2 + $0x188] sm:$0xff]
    %v455 = vld [vmem:[%s2 + $0x190] sm:$0xff]
    %v456 = vld [vmem:[%s2 + $0x198] sm:$0xff]
    %v457 = vld [vmem:[%s2 + $0x1a0] sm:$0xff]
    %v458 = vld [vmem:[%s2 + $0x1a8] sm:$0xff]
    %v459 = vld [vmem:[%s2 + $0x1b0] sm:$0xff]
    %v460 = vld [vmem:[%s2 + $0x1b8] sm:$0xff]
    %v461 = vld [vmem:[%s2 + $0x1c0] sm:$0xff]
    %v462 = vld [vmem:[%s2 + $0x1c8] sm:$0xff]
    %v463 = vld [vmem:[%s2 + $0x1d0] sm:$0xff]
    %v464 = vld [vmem:[%s2 + $0x1d8] sm:$0xff]
    %v465 = vld [vmem:[%s2 + $0x1e0] sm:$0xff]
    %v466 = vld [vmem:[%s2 + $0x1e8] sm:$0xff]
    %v467 = vld [vmem:[%s2 + $0x1f0] sm:$0xff]
    %v468 = vld [vmem:[%s2 + $0x1f8] sm:$0xff]
    %469 = vmatprep.subr.mxu0 0.0
    %470 = vmatpush1.msra.mxu0 %v405
    %471 = vmatprep.subr.mxu0 0.0
    %472 = vmatpush1.msra.mxu0 %v406
    %473 = vmatprep.subr.mxu0 0.0
    %474 = vmatpush1.msra.mxu0 %v407
    %475 = vmatprep.subr.mxu0 0.0
    %476 = vmatpush1.msra.mxu0 %v408
    %477 = vmatprep.subr.mxu0 0.0
    %478 = vmatpush1.msra.mxu0 %v409
    %479 = vmatprep.subr.mxu0 0.0
    %480 = vmatpush1.msra.mxu0 %v410
    %481 = vmatprep.subr.mxu0 0.0
    %482 = vmatpush1.msra.mxu0 %v411
    %483 = vmatprep.subr.mxu0 0.0
    %484 = vmatpush1.msra.mxu0 %v412
    %485 = vmatprep.subr.mxu0 0.0
    %486 = vmatpush1.msra.mxu0 %v413
    %487 = vmatprep.subr.mxu0 0.0
    %488 = vmatpush1.msra.mxu0 %v414
    %489 = vmatprep.subr.mxu0 0.0
    %490 = vmatpush1.msra.mxu0 %v415
    %491 = vmatprep.subr.mxu0 0.0
    %492 = vmatpush1.msra.mxu0 %v416
    %493 = vmatprep.subr.mxu0 0.0
    %494 = vmatpush1.msra.mxu0 %v417
    %495 = vmatprep.subr.mxu0 0.0
    %496 = vmatpush1.msra.mxu0 %v418
    %497 = vmatprep.subr.mxu0 0.0
    %498 = vmatpush1.msra.mxu0 %v419
    %499 = vmatprep.subr.mxu0 0.0
    %500 = vmatpush1.msra.mxu0 %v420
    %501 = vmatprep.subr.mxu0 0.0
    %502 = vmatpush1.msra.mxu0 %v421
    %503 = vmatprep.subr.mxu0 0.0
    %504 = vmatpush1.msra.mxu0 %v422
    %505 = vmatprep.subr.mxu0 0.0
    %506 = vmatpush1.msra.mxu0 %v423
    %507 = vmatprep.subr.mxu0 0.0
    %508 = vmatpush1.msra.mxu0 %v424
    %509 = vmatprep.subr.mxu0 0.0
    %510 = vmatpush1.msra.mxu0 %v425
    %511 = vmatprep.subr.mxu0 0.0
    %512 = vmatpush1.msra.mxu0 %v426
    %513 = vmatprep.subr.mxu0 0.0
    %514 = vmatpush1.msra.mxu0 %v427
    %515 = vmatprep.subr.mxu0 0.0
    %516 = vmatpush1.msra.mxu0 %v428
    %517 = vmatprep.subr.mxu0 0.0
    %518 = vmatpush1.msra.mxu0 %v429
    %519 = vmatprep.subr.mxu0 0.0
    %520 = vmatpush1.msra.mxu0 %v430
    %521 = vmatprep.subr.mxu0 0.0
    %522 = vmatpush1.msra.mxu0 %v431
    %523 = vmatprep.subr.mxu0 0.0
    %524 = vmatpush1.msra.mxu0 %v432
    %525 = vmatprep.subr.mxu0 0.0
    %526 = vmatpush1.msra.mxu0 %v433
    %527 = vmatprep.subr.mxu0 0.0
    %528 = vmatpush1.msra.mxu0 %v434
    %529 = vmatprep.subr.mxu0 0.0
    %530 = vmatpush1.msra.mxu0 %v435
    %531 = vmatprep.subr.mxu0 0.0
    %532 = vmatpush1.msra.mxu0 %v436
    %533 = vmatprep.mubr.f32.mxu0 %v374
    %534 = vmatmul.mubr.f32.gmra.mrb[0].mxu0 %v373
    %v535 = vpop.f32.mrb[0].mxu0
    %v536 = vadd.f32 0.0, %v535
    %v537 = vpop.f32.mrb[0].mxu0
    %538 = vmatprep.mubr.f32.mxu0 %v378
    %539 = vmatmul.mubr.f32.gmra.mrb[0].mxu0 %v377
    %v540 = vpop.f32.mrb[0].mxu0
    %v541 = vadd.f32 0.0, %v540
    %v542 = vpop.f32.mrb[0].mxu0
    %543 = vmatprep.mubr.f32.mxu0 %v382
    %544 = vmatmul.mubr.f32.gmra.mrb[0].mxu0 %v381
    %v545 = vpop.f32.mrb[0].mxu0
    %v546 = vadd.f32 0.0, %v545
    %v547 = vpop.f32.mrb[0].mxu0
    %548 = vmatprep.mubr.f32.mxu0 %v386
    %549 = vmatmul.mubr.f32.gmra.mrb[0].mxu0 %v385
    %v550 = vpop.f32.mrb[0].mxu0
    %v551 = vadd.f32 0.0, %v550
    %v552 = vpop.f32.mrb[0].mxu0
    %553 = vmatprep.mubr.f32.mxu0 %v390
    %554 = vmatmul.mubr.f32.gmra.mrb[0].mxu0 %v389
    %v555 = vpop.f32.mrb[0].mxu0
    %v556 = vadd.f32 0.0, %v555
    %v557 = vpop.f32.mrb[0].mxu0
    %558 = vmatprep.mubr.f32.mxu0 %v394
    %559 = vmatmul.mubr.f32.gmra.mrb[0].mxu0 %v393
    %v560 = vpop.f32.mrb[0].mxu0
    %v561 = vadd.f32 0.0, %v560
    %v562 = vpop.f32.mrb[0].mxu0
    %563 = vmatprep.mubr.f32.mxu0 %v398
    %564 = vmatmul.mubr.f32.gmra.mrb[0].mxu0 %v397
    %v565 = vpop.f32.mrb[0].mxu0
    %v566 = vadd.f32 0.0, %v565
    %v567 = vpop.f32.mrb[0].mxu0
    %568 = vmatprep.mubr.f32.mxu0 %v402
    %569 = vmatmul.mubr.f32.gmra.mrb[0].mxu0 %v401
    %v570 = vpop.f32.mrb[0].mxu0
    %v571 = vadd.f32 0.0, %v570
    %v572 = vpop.f32.mrb[0].mxu0
    %573 = vdwg.mxu0
    %574 = vmatprep.subr.mxu0 0.0
    %575 = vmatpush1.msra.mxu0 %v437
    %576 = vmatprep.subr.mxu0 0.0
    %577 = vmatpush1.msra.mxu0 %v438
    %578 = vmatprep.subr.mxu0 0.0
    %579 = vmatpush1.msra.mxu0 %v439
    %580 = vmatprep.subr.mxu0 0.0
    %581 = vmatpush1.msra.mxu0 %v440
    %582 = vmatprep.subr.mxu0 0.0
    %583 = vmatpush1.msra.mxu0 %v441
    %584 = vmatprep.subr.mxu0 0.0
    %585 = vmatpush1.msra.mxu0 %v442
    %586 = vmatprep.subr.mxu0 0.0
    %587 = vmatpush1.msra.mxu0 %v443
    %588 = vmatprep.subr.mxu0 0.0
    %589 = vmatpush1.msra.mxu0 %v444
    %590 = vmatprep.subr.mxu0 0.0
    %591 = vmatpush1.msra.mxu0 %v445
    %592 = vmatprep.subr.mxu0 0.0
    %593 = vmatpush1.msra.mxu0 %v446
    %594 = vmatprep.subr.mxu0 0.0
    %595 = vmatpush1.msra.mxu0 %v447
    %596 = vmatprep.subr.mxu0 0.0
    %597 = vmatpush1.msra.mxu0 %v448
    %598 = vmatprep.subr.mxu0 0.0
    %599 = vmatpush1.msra.mxu0 %v449
    %600 = vmatprep.subr.mxu0 0.0
    %601 = vmatpush1.msra.mxu0 %v450
    %602 = vmatprep.subr.mxu0 0.0
    %603 = vmatpush1.msra.mxu0 %v451
    %604 = vmatprep.subr.mxu0 0.0
    %605 = vmatpush1.msra.mxu0 %v452
    %606 = vmatprep.subr.mxu0 0.0
    %607 = vmatpush1.msra.mxu0 %v453
    %608 = vmatprep.subr.mxu0 0.0
    %609 = vmatpush1.msra.mxu0 %v454
    %610 = vmatprep.subr.mxu0 0.0
    %611 = vmatpush1.msra.mxu0 %v455
    %612 = vmatprep.subr.mxu0 0.0
    %613 = vmatpush1.msra.mxu0 %v456
    %614 = vmatprep.subr.mxu0 0.0
    %615 = vmatpush1.msra.mxu0 %v457
    %616 = vmatprep.subr.mxu0 0.0
    %617 = vmatpush1.msra.mxu0 %v458
    %618 = vmatprep.subr.mxu0 0.0
    %619 = vmatpush1.msra.mxu0 %v459
    %620 = vmatprep.subr.mxu0 0.0
    %621 = vmatpush1.msra.mxu0 %v460
    %622 = vmatprep.subr.mxu0 0.0
    %623 = vmatpush1.msra.mxu0 %v461
    %624 = vmatprep.subr.mxu0 0.0
    %625 = vmatpush1.msra.mxu0 %v462
    %626 = vmatprep.subr.mxu0 0.0
    %627 = vmatpush1.msra.mxu0 %v463
    %628 = vmatprep.subr.mxu0 0.0
    %629 = vmatpush1.msra.mxu0 %v464
    %630 = vmatprep.subr.mxu0 0.0
    %631 = vmatpush1.msra.mxu0 %v465
    %632 = vmatprep.subr.mxu0 0.0
    %633 = vmatpush1.msra.mxu0 %v466
    %634 = vmatprep.subr.mxu0 0.0
    %635 = vmatpush1.msra.mxu0 %v467
    %636 = vmatprep.subr.mxu0 0.0
    %637 = vmatpush1.msra.mxu0 %v468
    %638 = vmatprep.mubr.f32.mxu0 %v376
    %639 = vmatmul.mubr.f32.gmra.mrb[0].mxu0 %v375
    %v640 = vpop.f32.mrb[0].mxu0
    %v641 = vadd.f32 %v536, %v640
    %v642 = vpop.f32.mrb[0].mxu0
    %643 = vmatprep.mubr.f32.mxu0 %v380
    %644 = vmatmul.mubr.f32.gmra.mrb[0].mxu0 %v379
    %v645 = vpop.f32.mrb[0].mxu0
    %v646 = vadd.f32 %v541, %v645
    %v647 = vpop.f32.mrb[0].mxu0
    %648 = vmatprep.mubr.f32.mxu0 %v384
    %649 = vmatmul.mubr.f32.gmra.mrb[0].mxu0 %v383
    %v650 = vpop.f32.mrb[0].mxu0
    %v651 = vadd.f32 %v546, %v650
    %v652 = vpop.f32.mrb[0].mxu0
    %653 = vmatprep.mubr.f32.mxu0 %v388
    %654 = vmatmul.mubr.f32.gmra.mrb[0].mxu0 %v387
    %v655 = vpop.f32.mrb[0].mxu0
    %v656 = vadd.f32 %v551, %v655
    %v657 = vpop.f32.mrb[0].mxu0
    %658 = vmatprep.mubr.f32.mxu0 %v392
    %659 = vmatmul.mubr.f32.gmra.mrb[0].mxu0 %v391
    %v660 = vpop.f32.mrb[0].mxu0
    %v661 = vadd.f32 %v556, %v660
    %v662 = vpop.f32.mrb[0].mxu0
    %663 = vmatprep.mubr.f32.mxu0 %v396
    %664 = vmatmul.mubr.f32.gmra.mrb[0].mxu0 %v395
    %v665 = vpop.f32.mrb[0].mxu0
    %v666 = vadd.f32 %v561, %v665
    %v667 = vpop.f32.mrb[0].mxu0
    %668 = vmatprep.mubr.f32.mxu0 %v400
    %669 = vmatmul.mubr.f32.gmra.mrb[0].mxu0 %v399
    %v670 = vpop.f32.mrb[0].mxu0
    %v671 = vadd.f32 %v566, %v670
    %v672 = vpop.f32.mrb[0].mxu0
    %673 = vmatprep.mubr.f32.mxu0 %v404
    %674 = vmatmul.mubr.f32.gmra.mrb[0].mxu0 %v403
    %v675 = vpop.f32.mrb[0].mxu0
    %v676 = vadd.f32 %v571, %v675
    %v677 = vpop.f32.mrb[0].mxu0
    %678 = vdwg.mxu0
    %vm679 = vcmask 523264
    %680 = vst.msk [vmem:[#allocation2] sm:$0xff] %vm679, %v641
    %681 = vst.msk [vmem:[#allocation2 + $0x8] sm:$0xff] %vm679, %v646
    %682 = vst.msk [vmem:[#allocation2 + $0x10] sm:$0xff] %vm679, %v651
    %683 = vst.msk [vmem:[#allocation2 + $0x18] sm:$0xff] %vm679, %v656
    %684 = vst.msk [vmem:[#allocation2 + $0x20] sm:$0xff] %vm679, %v661
    %685 = vst.msk [vmem:[#allocation2 + $0x28] sm:$0xff] %vm679, %v666
    %686 = vst.msk [vmem:[#allocation2 + $0x30] sm:$0xff] %vm679, %v671
    %687 = vst.msk [vmem:[#allocation2 + $0x38] sm:$0xff] %vm679, %v676
    // Predicated region
    $region14: #{tpu_custom_call.1} parent=1 // pred_check
      _
    $region15: #{tpu_custom_call.1} parent=1 // pred_check_branch
      %689 = sbr.rel (0) target = $region17
    $region16: #{tpu_custom_call.1} parent=1 // pred_region
      %s691 = ssub.s32 1024, 1024
      %692 = vsyncadd [#allocation3], %s691
      %s693 = sshll.u32 [#allocation2], 4
      %s694 = int_to_ptr.vmem [resolvable:$true] %s693
      %699 = dma.vmem_to_hbm [thread:$0]  %s694, 1024, %s3, [#allocation3], 128, 128, 8
    $region17: #{tpu_custom_call.1} parent=1 // pred_fallthru
      _
    // Predicated region
    $region18: #{tpu_custom_call.1} parent=1 // pred_check
      _
    $region19: #{tpu_custom_call.1} parent=1 // pred_check_branch
      %701 = sbr.rel (0) target = $region21
    $region20: #{tpu_custom_call.1} parent=1 // pred_region
      %702 = dma.done [#allocation3], 1024
    $region21: #{tpu_custom_call.1} parent=1 // pred_fallthru
      _
    %703 = vsyncpa [#allocation3], 1

</llo_original>
